<compile_context>
chip_gen: v5e
topology: v5e:2x2
jax: 0.10.0
libtpu: 0.0.40
codegen_flags: <defaults>
</compile_context>

<pallas_src>
import functools

import jax
import jax.numpy as jnp
from jax.experimental import pallas as pl
from jax.experimental.pallas import tpu as pltpu

_LANE = 128
_SUBLANE = 8


def _round_up(x, m):
    return ((x + m - 1) // m) * m


def _soft_iou_partial_kernel(pred_ref, target_ref, inter_out_ref, sum_out_ref,
                             acc_inter, acc_sum, *, tile_d, k_per_split,
                             true_d, mask_tail):
    # pred_ref / target_ref: (N, TILE_D) VMEM tiles.
    # inter_out_ref / sum_out_ref: (N, 128) per-split partial outputs.
    # acc_inter / acc_sum: (N, 1) f32 running accumulators (VMEM scratch).
    k = pl.program_id(1)

    @pl.when(k == 0)
    def _init():
        acc_inter[...] = jnp.zeros_like(acc_inter)
        acc_sum[...] = jnp.zeros_like(acc_sum)

    pred = pred_ref[...].astype(jnp.float32)
    tgt = target_ref[...].astype(jnp.float32)

    if mask_tail:
        # The last tile along D contains unspecified data past column true_d;
        # mask it instead of padding the inputs in HBM.
        p = pl.program_id(0)
        base = (p * k_per_split + k) * tile_d
        col = jax.lax.broadcasted_iota(jnp.int32, pred.shape, dimension=1)
        valid = (col + base) < true_d
        pred = jnp.where(valid, pred, 0.0)
        tgt = jnp.where(valid, tgt, 0.0)

    # Per-sample partial reductions for this tile.  The VPU/XLU work here is
    # far below the DMA time for the tile, so it stays hidden in the pipeline.
    acc_inter[...] += jnp.sum(pred * tgt, axis=1, keepdims=True)
    acc_sum[...] += jnp.sum(pred + tgt, axis=1, keepdims=True)

    @pl.when(k == pl.num_programs(1) - 1)
    def _finalize():
        inter_out_ref[...] = jnp.broadcast_to(acc_inter[...], inter_out_ref.shape)
        sum_out_ref[...] = jnp.broadcast_to(acc_sum[...], sum_out_ref.shape)


def soft_iou_loss(pred, target, *, max_tile_bytes=2 * 1024 * 1024):
    """SoftIoULoss forward. pred/target: (N, C, H, W) arrays. Returns scalar."""
    assert pred.shape == target.shape
    assert pred.ndim >= 2
    n = pred.shape[0]
    d = 1
    for s in pred.shape[1:]:
        d *= s

    pred2 = pred.reshape(n, d)
    target2 = target.reshape(n, d)

    # --- tile selection ------------------------------------------------------
    # VMEM per input buffer = round_up(N, 8) * tile_d * 4 bytes (sublane pad);
    # cap at ~max_tile_bytes so 2 inputs x 2 pipeline buffers stay well under
    # the default scoped-VMEM limit on every TPU generation.
    sublanes = _round_up(max(n, 1), _SUBLANE)
    itemsize = 4  # accumulate in f32; inputs promoted in-kernel
    max_tile_d = max(_LANE, (max_tile_bytes // (sublanes * itemsize)) // _LANE * _LANE)
    tile_d = min(_round_up(d, _LANE), max_tile_d)
    k_total = pl.cdiv(d, tile_d)

    # Leading "parallel" axis: split the D-tiles across v7x's two TensorCores
    # when the tile count splits evenly (harmless sequential loop elsewhere).
    p_splits = 2 if (k_total >= 2 and k_total % 2 == 0) else 1
    k_per_split = k_total // p_splits

    mask_tail = (d % tile_d) != 0

    kernel = functools.partial(
        _soft_iou_partial_kernel,
        tile_d=tile_d,
        k_per_split=k_per_split,
        true_d=d,
        mask_tail=mask_tail,
    )

    out_shape = (
        jax.ShapeDtypeStruct((p_splits, n, _LANE), jnp.float32),
        jax.ShapeDtypeStruct((p_splits, n, _LANE), jnp.float32),
    )

    in_spec = pl.BlockSpec((n, tile_d), lambda p, k: (0, p * k_per_split + k))
    out_spec = pl.BlockSpec((None, n, _LANE), lambda p, k: (p, 0, 0))

    inter_p, sum_p = pl.pallas_call(
        kernel,
        out_shape=out_shape,
        grid_spec=pltpu.PrefetchScalarGridSpec(
            num_scalar_prefetch=0,
            grid=(p_splits, k_per_split),
            in_specs=[in_spec, in_spec],
            out_specs=[out_spec, out_spec],
            scratch_shapes=[
                pltpu.VMEM((n, 1), jnp.float32),
                pltpu.VMEM((n, 1), jnp.float32),
            ],
        ),
        compiler_params=pltpu.CompilerParams(
            dimension_semantics=("parallel", "arbitrary"),
        ),
    )(pred2, target2)

    # Tiny epilogue in plain JAX: combine per-split partials, then iou + mean.
    inter = jnp.sum(inter_p[:, :, 0], axis=0)   # (N,)  sum(pred * target)
    both = jnp.sum(sum_p[:, :, 0], axis=0)      # (N,)  pred_sum + target_sum
    smooth = jnp.float32(1.0)
    iou = (inter + smooth) / (both - inter + smooth)
    return jnp.float32(1.0) - jnp.mean(iou)


def _reference_soft_iou_loss(pred, target):
    smooth = 1.0
    inter = jnp.sum(pred * target, axis=(1, 2, 3))
    psum = jnp.sum(pred, axis=(1, 2, 3))
    tsum = jnp.sum(target, axis=(1, 2, 3))
    loss = (inter + smooth) / (psum + tsum - inter + smooth)
    return 1.0 - jnp.mean(loss)


if __name__ == "__main__":
    key = jax.random.PRNGKey(0)
    k1, k2 = jax.random.split(key)

    # Small NCHW shapes: batch=2, channels=4, spatial=16x16 (D = 1024, one tile).
    pred = jax.nn.sigmoid(jax.random.normal(k1, (2, 4, 16, 16), dtype=jnp.float32))
    target = (jax.random.uniform(k2, (2, 4, 16, 16)) > 0.5).astype(jnp.float32)

    loss = soft_iou_loss(pred, target)
    jax.block_until_ready(loss)
    ref = _reference_soft_iou_loss(pred, target)
    assert jnp.allclose(loss, ref, atol=1e-5, rtol=1e-5), (loss, ref)

    # Second check: force the multi-tile + parallel-split + tail-mask path at
    # a small size by shrinking the per-buffer tile budget (D = 969, 4 tiles).
    k3, k4 = jax.random.split(k2)
    pred2 = jax.nn.sigmoid(jax.random.normal(k3, (2, 3, 17, 19), dtype=jnp.float32))
    target2 = (jax.random.uniform(k4, (2, 3, 17, 19)) > 0.5).astype(jnp.float32)

    loss2 = soft_iou_loss(pred2, target2, max_tile_bytes=8 * 1024)
    jax.block_until_ready(loss2)
    ref2 = _reference_soft_iou_loss(pred2, target2)
    assert jnp.allclose(loss2, ref2, atol=1e-5, rtol=1e-5), (loss2, ref2)

    print("KERNEL_OK")
</pallas_src>

<mosaic_0001>
module attributes {stable_mosaic.version = 11 : i64} {
  func.func @_soft_iou_partial_kernel(%arg0: i32, %arg1: i32, %arg2: memref<2x1024xf32, #tpu.memory_space<vmem>>, %arg3: memref<2x1024xf32, #tpu.memory_space<vmem>>, %arg4: memref<1x2x128xf32, #tpu.memory_space<vmem>>, %arg5: memref<1x2x128xf32, #tpu.memory_space<vmem>>, %arg6: memref<2x1xf32, #tpu.memory_space<vmem>>, %arg7: memref<2x1xf32, #tpu.memory_space<vmem>>) attributes {dimension_semantics = [#tpu.dimension_semantics<parallel>, #tpu.dimension_semantics<arbitrary>], iteration_bounds = array<i64: 1, 1>, scalar_prefetch = 0 : i64, scratch_operands = 2 : i64, tpu.core_type = #tpu.core_type<tc>, window_params = [{transform_indices = @transform_0, window_bounds = array<i64: 2, 1024>}, {transform_indices = @transform_1, window_bounds = array<i64: 2, 1024>}, {transform_indices = @transform_2, window_bounds = array<i64: 1, 2, 128>}, {transform_indices = @transform_3, window_bounds = array<i64: 1, 2, 128>}]} {
    %c0_i32 = arith.constant 0 : i32
    %0 = arith.cmpi eq, %arg1, %c0_i32 : i32
    %1 = arith.extui %0 : i1 to i32
    %c0_i32_0 = arith.constant 0 : i32
    %2 = arith.cmpi ne, %1, %c0_i32_0 : i32
    scf.if %2 {
      %cst_15 = arith.constant 0.000000e+00 : f32
      %20 = vector.broadcast %cst_15 : f32 to vector<2x1xf32>
      %c0_16 = arith.constant 0 : index
      %c0_17 = arith.constant 0 : index
      %21 = vector.load %arg6[%c0_16, %c0_17] : memref<2x1xf32, #tpu.memory_space<vmem>>, vector<2x1xf32>
      tpu.vector_store %arg6[%c0_16, %c0_17], %20 {strides = array<i32>} : memref<2x1xf32, #tpu.memory_space<vmem>>, vector<2x1xf32>,
      %cst_18 = arith.constant 0.000000e+00 : f32
      %22 = vector.broadcast %cst_18 : f32 to vector<2x1xf32>
      %c0_19 = arith.constant 0 : index
      %c0_20 = arith.constant 0 : index
      %23 = vector.load %arg7[%c0_19, %c0_20] : memref<2x1xf32, #tpu.memory_space<vmem>>, vector<2x1xf32>
      tpu.vector_store %arg7[%c0_19, %c0_20], %22 {strides = array<i32>} : memref<2x1xf32, #tpu.memory_space<vmem>>, vector<2x1xf32>,
    } else {
    }
    %c0 = arith.constant 0 : index
    %c0_1 = arith.constant 0 : index
    %3 = vector.load %arg2[%c0, %c0_1] : memref<2x1024xf32, #tpu.memory_space<vmem>>, vector<2x1024xf32>
    %c0_2 = arith.constant 0 : index
    %c0_3 = arith.constant 0 : index
    %4 = vector.load %arg3[%c0_2, %c0_3] : memref<2x1024xf32, #tpu.memory_space<vmem>>, vector<2x1024xf32>
    %c0_4 = arith.constant 0 : index
    %c0_5 = arith.constant 0 : index
    %5 = vector.load %arg6[%c0_4, %c0_5] : memref<2x1xf32, #tpu.memory_space<vmem>>, vector<2x1xf32>
    %6 = arith.mulf %3, %4 : vector<2x1024xf32>
    %cst = arith.constant dense<0.000000e+00> : vector<2xf32>
    %7 = vector.multi_reduction <add>, %6, %cst [1] : vector<2x1024xf32> to vector<2xf32>
    %8 = vector.shape_cast %7 : vector<2xf32> to vector<2x1xf32>
    %9 = arith.addf %5, %8 : vector<2x1xf32>
    %c0_6 = arith.constant 0 : index
    %c0_7 = arith.constant 0 : index
    %10 = vector.load %arg6[%c0_6, %c0_7] : memref<2x1xf32, #tpu.memory_space<vmem>>, vector<2x1xf32>
    tpu.vector_store %arg6[%c0_6, %c0_7], %9 {strides = array<i32>} : memref<2x1xf32, #tpu.memory_space<vmem>>, vector<2x1xf32>,
    %c0_8 = arith.constant 0 : index
    %c0_9 = arith.constant 0 : index
    %11 = vector.load %arg7[%c0_8, %c0_9] : memref<2x1xf32, #tpu.memory_space<vmem>>, vector<2x1xf32>
    %12 = arith.addf %3, %4 : vector<2x1024xf32>
    %cst_10 = arith.constant dense<0.000000e+00> : vector<2xf32>
    %13 = vector.multi_reduction <add>, %12, %cst_10 [1] : vector<2x1024xf32> to vector<2xf32>
    %14 = vector.shape_cast %13 : vector<2xf32> to vector<2x1xf32>
    %15 = arith.addf %11, %14 : vector<2x1xf32>
    %c0_11 = arith.constant 0 : index
    %c0_12 = arith.constant 0 : index
    %16 = vector.load %arg7[%c0_11, %c0_12] : memref<2x1xf32, #tpu.memory_space<vmem>>, vector<2x1xf32>
    tpu.vector_store %arg7[%c0_11, %c0_12], %15 {strides = array<i32>} : memref<2x1xf32, #tpu.memory_space<vmem>>, vector<2x1xf32>,
    %c0_i32_13 = arith.constant 0 : i32
    %17 = arith.cmpi eq, %arg1, %c0_i32_13 : i32
    %18 = arith.extui %17 : i1 to i32
    %c0_i32_14 = arith.constant 0 : i32
    %19 = arith.cmpi ne, %18, %c0_i32_14 : i32
    scf.if %19 {
      %c0_15 = arith.constant 0 : index
      %c0_16 = arith.constant 0 : index
      %20 = vector.load %arg6[%c0_15, %c0_16] : memref<2x1xf32, #tpu.memory_space<vmem>>, vector<2x1xf32>
      %21 = vector.shape_cast %20 : vector<2x1xf32> to vector<2x1xf32>
      %22 = vector.broadcast %21 : vector<2x1xf32> to vector<2x128xf32>
      %c0_17 = arith.constant 0 : index
      %c0_18 = arith.constant 0 : index
      %c0_19 = arith.constant 0 : index
      %23 = vector.load %arg4[%c0_17, %c0_18, %c0_19] : memref<1x2x128xf32, #tpu.memory_space<vmem>>, vector<1x2x128xf32>
      %24 = vector.shape_cast %23 : vector<1x2x128xf32> to vector<2x128xf32>
      %25 = vector.shape_cast %22 : vector<2x128xf32> to vector<1x2x128xf32>
      tpu.vector_store %arg4[%c0_17, %c0_18, %c0_19], %25 {strides = array<i32>} : memref<1x2x128xf32, #tpu.memory_space<vmem>>, vector<1x2x128xf32>,
      %c0_20 = arith.constant 0 : index
      %c0_21 = arith.constant 0 : index
      %26 = vector.load %arg7[%c0_20, %c0_21] : memref<2x1xf32, #tpu.memory_space<vmem>>, vector<2x1xf32>
      %27 = vector.shape_cast %26 : vector<2x1xf32> to vector<2x1xf32>
      %28 = vector.broadcast %27 : vector<2x1xf32> to vector<2x128xf32>
      %c0_22 = arith.constant 0 : index
      %c0_23 = arith.constant 0 : index
      %c0_24 = arith.constant 0 : index
      %29 = vector.load %arg5[%c0_22, %c0_23, %c0_24] : memref<1x2x128xf32, #tpu.memory_space<vmem>>, vector<1x2x128xf32>
      %30 = vector.shape_cast %29 : vector<1x2x128xf32> to vector<2x128xf32>
      %31 = vector.shape_cast %28 : vector<2x128xf32> to vector<1x2x128xf32>
      tpu.vector_store %arg5[%c0_22, %c0_23, %c0_24], %31 {strides = array<i32>} : memref<1x2x128xf32, #tpu.memory_space<vmem>>, vector<1x2x128xf32>,
    } else {
    }
    return
  }
  func.func @transform_0(%arg0: i32, %arg1: i32) -> (i32, i32) {
    %c1_i32 = arith.constant 1 : i32
    %0 = arith.muli %arg0, %c1_i32 : i32
    %1 = arith.addi %0, %arg1 : i32
    %c0_i32 = arith.constant 0 : i32
    %c0_i32_0 = arith.constant 0 : i32
    return %c0_i32, %1 : i32, i32
  }
  func.func @transform_1(%arg0: i32, %arg1: i32) -> (i32, i32) {
    %c1_i32 = arith.constant 1 : i32
    %0 = arith.muli %arg0, %c1_i32 : i32
    %1 = arith.addi %0, %arg1 : i32
    %c0_i32 = arith.constant 0 : i32
    %c0_i32_0 = arith.constant 0 : i32
    return %c0_i32, %1 : i32, i32
  }
  func.func @transform_2(%arg0: i32, %arg1: i32) -> (i32, i32, i32) {
    %c0_i32 = arith.constant 0 : i32
    %c0_i32_0 = arith.constant 0 : i32
    %c0_i32_1 = arith.constant 0 : i32
    return %arg0, %c0_i32, %c0_i32_0 : i32, i32, i32
  }
  func.func @transform_3(%arg0: i32, %arg1: i32) -> (i32, i32, i32) {
    %c0_i32 = arith.constant 0 : i32
    %c0_i32_0 = arith.constant 0 : i32
    %c0_i32_1 = arith.constant 0 : i32
    return %arg0, %c0_i32, %c0_i32_0 : i32, i32, i32
  }
}

</mosaic_0001>

<llo_original>
// kernel: tpu_custom_call.1
$region0: #{tpu_custom_call.1}
  #allocation0 [shape = 'u32[]', space=smem, size = 0x4, offset = 0x4, fixed_abs, tag = 'smem constant byte address 0x4 - core index']
  #allocation1 [shape = 'u32[72,128]{1,0:T(1,128)}', space=vmem, size = 0x9000, scoped, tag = 'internal scratch']
  #allocation2 [shape = 'f32[2,1]{1,0:T(2,128)}', space=vmem, size = 0x400, scoped, tag = 'scratch operand']
  #allocation3 [shape = 'f32[2,1]{1,0:T(2,128)}', space=vmem, size = 0x400, scoped, tag = 'scratch operand']
  %s0 = inlined_call_operand.hbm [shape: f32[2,1024], index: 0, kind: input, shape index: {}]
  %s1 = inlined_call_operand.hbm [shape: f32[2,1024], index: 1, kind: input, shape index: {}]
  %s2 = inlined_call_operand.hbm [shape: f32[1,2,128], index: 2, kind: output, shape index: {0}]
  %s3 = inlined_call_operand.hbm [shape: f32[1,2,128], index: 3, kind: output, shape index: {1}]
  %4 = xla_tuple %s2, %s3
  %s5 = sld [smem:[#allocation0]]
  $region42: #{tpu_custom_call.1} parent=0
    _
  %s7 = ssub.s32 1, %s5
  %s8 = scalar_select 0, %s7, %s5
  $region1: #{tpu_custom_call.1} parent=0
    #allocation4 [shape = 'u8[8192]{0}', space=vmem, size = 0x2000, scoped, tag = 'input window, operand 0, single buffered']
    #allocation5 [shape = 's32[1]{0}', space=sflag, size = 0x4, scoped, tag = 'scoped memory for tpu_custom_call.1']
    #allocation6 [shape = 's32[1]{0}', space=sflag, size = 0x4, scoped, tag = 'scoped memory for tpu_custom_call.1']
    #allocation7 [shape = 'u8[8192]{0}', space=vmem, size = 0x2000, scoped, tag = 'input window, operand 1, single buffered']
    #allocation8 [shape = 's32[1]{0}', space=sflag, size = 0x4, scoped, tag = 'scoped memory for tpu_custom_call.1']
    #allocation9 [shape = 'u8[1024]{0}', space=vmem, size = 0x400, scoped, tag = 'output window, operand 0, single buffered']
    #allocation10 [shape = 'u8[1024]{0}', space=vmem, size = 0x400, scoped, tag = 'output window, operand 1, single buffered']
    #allocation11 [shape = 's32[1]{0}', space=sflag, size = 0x4, scoped, tag = 'scoped memory for tpu_custom_call.1']
    %9 = vsyncpa [#allocation5], 0
    %10 = vsyncpa [#allocation8], 0
    %11 = vsyncpa [#allocation6], 0
    %12 = vsyncpa [#allocation11], 0
    // Predicated region
    $region2: #{tpu_custom_call.1} parent=1 // pred_check
      _
    $region3: #{tpu_custom_call.1} parent=1 // pred_check_branch
      %14 = sbr.rel (0) target = $region5
    $region4: #{tpu_custom_call.1} parent=1 // pred_region
      %s15 = sadd.s32 0, 0
      %s16 = smul.u32 8, %s15
      %18 = vsyncadd [#allocation5], 0
      %s19 = smul.addr %s16, 2
      %s20 = scalar_lea.hbm %s0, %s19
      %s22 = sshll.u32 %s20, 4
      %s23 = int_to_ptr.hbm [resolvable:$true] %s22
      %s24 = sshll.u32 [#allocation4], 4
      %s25 = int_to_ptr.vmem [resolvable:$true] %s24
      %27 = dma.hbm_to_vmem [thread:$0]  %s23, 256, %s25, [#allocation5]
    $region5: #{tpu_custom_call.1} parent=1 // pred_fallthru
      _
    // Predicated region
    $region6: #{tpu_custom_call.1} parent=1 // pred_check
      _
    $region7: #{tpu_custom_call.1} parent=1 // pred_check_branch
      %29 = sbr.rel (0) target = $region9
    $region8: #{tpu_custom_call.1} parent=1 // pred_region
      %s30 = sadd.s32 0, 0
      %s31 = smul.u32 8, %s30
      %33 = vsyncadd [#allocation8], 0
      %s34 = smul.addr %s31, 2
      %s35 = scalar_lea.hbm %s1, %s34
      %s37 = sshll.u32 %s35, 4
      %s38 = int_to_ptr.hbm [resolvable:$true] %s37
      %s39 = sshll.u32 [#allocation7], 4
      %s40 = int_to_ptr.vmem [resolvable:$true] %s39
      %42 = dma.hbm_to_vmem [thread:$0]  %s38, 256, %s40, [#allocation8]
    $region9: #{tpu_custom_call.1} parent=1 // pred_fallthru
      _
    // Predicated region
    $region10: #{tpu_custom_call.1} parent=1 // pred_check
      _
    $region11: #{tpu_custom_call.1} parent=1 // pred_check_branch
      %44 = sbr.rel (0) target = $region13
    $region12: #{tpu_custom_call.1} parent=1 // pred_region
      %46 = dma.done [#allocation5], 256
    $region13: #{tpu_custom_call.1} parent=1 // pred_fallthru
      _
    // Predicated region
    $region14: #{tpu_custom_call.1} parent=1 // pred_check
      _
    $region15: #{tpu_custom_call.1} parent=1 // pred_check_branch
      %48 = sbr.rel (0) target = $region17
    $region16: #{tpu_custom_call.1} parent=1 // pred_region
      %50 = dma.done [#allocation8], 256
    $region17: #{tpu_custom_call.1} parent=1 // pred_fallthru
      _
    %s51 = sadd.s32 0, 0
    %s52 = smul.u32 8, %s51
    %s53 = sadd.s32 0, 0
    %s54 = smul.u32 8, %s53
    %p55 = scmp.eq.s32.totalorder 0, 0
    // Predicated region
    $region18: #{tpu_custom_call.1} parent=1 // pred_check
      %p56 = pneg %p55
    $region19: #{tpu_custom_call.1} parent=1 // pred_check_branch
      %58 = sbr.rel (%p56) target = $region21
    $region20: #{tpu_custom_call.1} parent=1 // pred_region
      %vm59 = vcmask 1024
      %60 = vst.msk [vmem:[#allocation2] sm:$0x3] %vm59, 0.0
      %61 = vst.msk [vmem:[#allocation3] sm:$0x3] %vm59, 0.0
    $region21: #{tpu_custom_call.1} parent=1 // pred_fallthru
      _
    %v62 = vld [vmem:[#allocation4] sm:$0xff]
    %v63 = vld [vmem:[#allocation4 + $0x8] sm:$0xff]
    %v64 = vld [vmem:[#allocation7] sm:$0xff]
    %v65 = vld [vmem:[#allocation7 + $0x8] sm:$0xff]
    %v66 = vld [vmem:[#allocation2] sm:$0x3]
    %v67 = vmul.f32 %v62, %v64
    %v68 = vmul.f32 %v63, %v65
    %71 = vst [vmem:[#allocation1] ss:$4 sm:$0xff] %v67
    %s72 = scalar_lea.vmem [#allocation1], 32
    %73 = vst [vmem:[%s72] ss:$4 sm:$0xff] %v68
    %v74 = vld.sshfl [vmem:[#allocation1] sm:$0xff pattern:$0x73625140]
    %v75 = vld.sshfl [vmem:[#allocation1 + $0x8] sm:$0xff pattern:$0x73625140]
    %v76 = vld.sshfl [vmem:[#allocation1 + $0x10] sm:$0xff pattern:$0x73625140]
    %v77 = vld.sshfl [vmem:[#allocation1 + $0x18] sm:$0xff pattern:$0x73625140]
    %v78 = vld.sshfl [vmem:[#allocation1 + $0x20] sm:$0xff pattern:$0x73625140]
    %v79 = vld.sshfl [vmem:[#allocation1 + $0x28] sm:$0xff pattern:$0x73625140]
    %v80 = vld.sshfl [vmem:[#allocation1 + $0x30] sm:$0xff pattern:$0x73625140]
    %v81 = vld.sshfl [vmem:[#allocation1 + $0x38] sm:$0xff pattern:$0x73625140]
    %vm90 = vcmask 1041408
    %v91 = vsel %vm90, %v74, 0.0
    %v92 = vsel %vm90, %v75, 0.0
    %v93 = vadd.f32 %v91, %v92
    %v94 = vsel %vm90, %v76, 0.0
    %v95 = vadd.f32 %v93, %v94
    %v96 = vsel %vm90, %v77, 0.0
    %v97 = vadd.f32 %v95, %v96
    %v98 = vsel %vm90, %v78, 0.0
    %v99 = vadd.f32 %v97, %v98
    %v100 = vsel %vm90, %v79, 0.0
    %v101 = vadd.f32 %v99, %v100
    %v102 = vsel %vm90, %v80, 0.0
    %v103 = vadd.f32 %v101, %v102
    %v104 = vsel %vm90, %v81, 0.0
    %v105 = vadd.f32 %v103, %v104
    %106 = vadd.xlane.f32.xlu0 %v105
    %v107 = vpop.xlane.xlu0 %106
    %v108 = vadd.f32 %v66, %v107
    %vm109 = vcmask 1024
    %110 = vst.msk [vmem:[#allocation2] sm:$0x3] %vm109, %v108
    %v111 = vld [vmem:[#allocation3] sm:$0x3]
    %v112 = vadd.f32 %v62, %v64
    %v113 = vadd.f32 %v63, %v65
    %116 = vst [vmem:[#allocation1] ss:$4 sm:$0xff] %v112
    %s117 = scalar_lea.vmem [#allocation1], 32
    %118 = vst [vmem:[%s117] ss:$4 sm:$0xff] %v113
    %v119 = vld.sshfl [vmem:[#allocation1] sm:$0xff pattern:$0x73625140]
    %v120 = vld.sshfl [vmem:[#allocation1 + $0x8] sm:$0xff pattern:$0x73625140]
    %v121 = vld.sshfl [vmem:[#allocation1 + $0x10] sm:$0xff pattern:$0x73625140]
    %v122 = vld.sshfl [vmem:[#allocation1 + $0x18] sm:$0xff pattern:$0x73625140]
    %v123 = vld.sshfl [vmem:[#allocation1 + $0x20] sm:$0xff pattern:$0x73625140]
    %v124 = vld.sshfl [vmem:[#allocation1 + $0x28] sm:$0xff pattern:$0x73625140]
    %v125 = vld.sshfl [vmem:[#allocation1 + $0x30] sm:$0xff pattern:$0x73625140]
    %v126 = vld.sshfl [vmem:[#allocation1 + $0x38] sm:$0xff pattern:$0x73625140]
    %v135 = vsel %vm90, %v119, 0.0
    %v136 = vsel %vm90, %v120, 0.0
    %v137 = vadd.f32 %v135, %v136
    %v138 = vsel %vm90, %v121, 0.0
    %v139 = vadd.f32 %v137, %v138
    %v140 = vsel %vm90, %v122, 0.0
    %v141 = vadd.f32 %v139, %v140
    %v142 = vsel %vm90, %v123, 0.0
    %v143 = vadd.f32 %v141, %v142
    %v144 = vsel %vm90, %v124, 0.0
    %v145 = vadd.f32 %v143, %v144
    %v146 = vsel %vm90, %v125, 0.0
    %v147 = vadd.f32 %v145, %v146
    %v148 = vsel %vm90, %v126, 0.0
    %v149 = vadd.f32 %v147, %v148
    %150 = vadd.xlane.f32.xlu0 %v149
    %v151 = vpop.xlane.xlu0 %150
    %v152 = vadd.f32 %v111, %v151
    %153 = vst.msk [vmem:[#allocation3] sm:$0x3] %vm109, %v152
    // Predicated region
    $region22: #{tpu_custom_call.1} parent=1 // pred_check
      %p154 = pneg %p55
    $region23: #{tpu_custom_call.1} parent=1 // pred_check_branch
      %156 = sbr.rel (%p154) target = $region25
    $region24: #{tpu_custom_call.1} parent=1 // pred_region
      %v157 = vld [vmem:[#allocation2] sm:$0x3]
      %159 = vset.pattern.permute.xlu0 0
      %160 = vperm.xlu0 %159, %v157
      %v161 = vpop.permute.xlu0 %160
      %163 = vst [vmem:[#allocation9] sm:$0x3] %v161
      %v164 = vld [vmem:[#allocation3] sm:$0x3]
      %166 = vset.pattern.permute.xlu0 0
      %167 = vperm.xlu0 %166, %v164
      %v168 = vpop.permute.xlu0 %167
      %170 = vst [vmem:[#allocation10] sm:$0x3] %v168
    $region25: #{tpu_custom_call.1} parent=1 // pred_fallthru
      _
    // Predicated region
    $region26: #{tpu_custom_call.1} parent=1 // pred_check
      _
    $region27: #{tpu_custom_call.1} parent=1 // pred_check_branch
      %172 = sbr.rel (0) target = $region29
    $region28: #{tpu_custom_call.1} parent=1 // pred_region
      %174 = vsyncadd [#allocation6], 0
      %s176 = sshll.u32 [#allocation9], 4
      %s177 = int_to_ptr.vmem [resolvable:$true] %s176
      %s178 = sshll.u32 %s2, 4
      %s179 = int_to_ptr.hbm [resolvable:$true] %s178
      %181 = dma.vmem_to_hbm [thread:$0]  %s177, 32, %s179, [#allocation6]
    $region29: #{tpu_custom_call.1} parent=1 // pred_fallthru
      _
    // Predicated region
    $region30: #{tpu_custom_call.1} parent=1 // pred_check
      _
    $region31: #{tpu_custom_call.1} parent=1 // pred_check_branch
      %183 = sbr.rel (0) target = $region33
    $region32: #{tpu_custom_call.1} parent=1 // pred_region
      %185 = vsyncadd [#allocation11], 0
      %s187 = sshll.u32 [#allocation10], 4
      %s188 = int_to_ptr.vmem [resolvable:$true] %s187
      %s189 = sshll.u32 %s3, 4
      %s190 = int_to_ptr.hbm [resolvable:$true] %s189
      %192 = dma.vmem_to_hbm [thread:$0]  %s188, 32, %s190, [#allocation11]
    $region33: #{tpu_custom_call.1} parent=1 // pred_fallthru
      _
    // Predicated region
    $region34: #{tpu_custom_call.1} parent=1 // pred_check
      _
    $region35: #{tpu_custom_call.1} parent=1 // pred_check_branch
      %194 = sbr.rel (0) target = $region37
    $region36: #{tpu_custom_call.1} parent=1 // pred_region
      %196 = dma.done [#allocation6], 32
    $region37: #{tpu_custom_call.1} parent=1 // pred_fallthru
      _
    // Predicated region
    $region38: #{tpu_custom_call.1} parent=1 // pred_check
      _
    $region39: #{tpu_custom_call.1} parent=1 // pred_check_branch
      %198 = sbr.rel (0) target = $region41
    $region40: #{tpu_custom_call.1} parent=1 // pred_region
      %200 = dma.done [#allocation11], 32
    $region41: #{tpu_custom_call.1} parent=1 // pred_fallthru
      _
    %201 = vsyncpa [#allocation5], 1
    %202 = vsyncpa [#allocation8], 1
    %203 = vsyncpa [#allocation6], 1
    %204 = vsyncpa [#allocation11], 1

</llo_original>
